<compile_context>
chip_gen: v6e
topology: v6e:2x2x1
jax: 0.10.0
libtpu: 0.0.40
codegen_flags: <defaults>
</compile_context>

<pallas_src>
import functools

import jax
import jax.numpy as jnp
from jax import lax
from jax.experimental import pallas as pl
from jax.experimental.pallas import tpu as pltpu


def _round_up(x, m):
    return (x + m - 1) // m * m


def _ffn_kernel(x_ref, w1_ref, w2_ref, gamma_ref, beta_ref, o_ref, *,
                alpha, eps, valid_h):
    # x_ref: (tm, Hp)   w1_ref/w2_ref: (Hp, Hp)   gamma/beta: (1, Hp)
    x = x_ref[...]

    # fc: Linear -> ReLU -> Linear (bias-free).  Operands stay in their native
    # dtype (bf16 hits the fast MXU path); accumulation is f32.
    h = jnp.dot(x, w1_ref[...], preferred_element_type=jnp.float32)
    h = jnp.maximum(h, 0.0).astype(x.dtype)
    y = jnp.dot(h, w2_ref[...], preferred_element_type=jnp.float32)

    # Residual add with alpha scaling, in f32.
    y = y + alpha * x.astype(jnp.float32)

    # LayerNorm over the valid (un-padded) hidden lanes, in f32.
    hp = y.shape[-1]
    inv_h = 1.0 / valid_h
    mean = jnp.sum(y, axis=-1, keepdims=True) * inv_h
    centered = y - mean
    if valid_h != hp:
        # Padded lanes of y are exactly zero (zero-padded x and weights), so
        # the mean above is already correct; only the variance needs masking.
        lane = lax.broadcasted_iota(jnp.int32, y.shape, dimension=1)
        centered = jnp.where(lane < valid_h, centered, 0.0)
    var = jnp.sum(centered * centered, axis=-1, keepdims=True) * inv_h
    y_norm = centered * lax.rsqrt(var + eps)
    out = (y_norm * gamma_ref[...].astype(jnp.float32)
           + beta_ref[...].astype(jnp.float32))

    o_ref[...] = out.astype(o_ref.dtype)


def ffn_pallas(x, w1, w2, gamma, beta, *, alpha=1.0, eps=1e-5, tm=256):
    """x: (..., H). w1, w2: (H, H) laid out so y = x @ w. gamma/beta: (H,)."""
    orig_shape = x.shape
    H = orig_shape[-1]
    x2d = x.reshape(-1, H)
    M = x2d.shape[0]

    # Lane-dense hidden dim: pad H up to a multiple of 128.
    Hp = max(_round_up(H, 128), 128)
    # Row tile: large enough to fill the MXU, never larger than the padded M,
    # always a multiple of 8 (sublane granularity).
    tm_eff = min(_round_up(int(tm), 8), _round_up(M, 8))
    Mp = _round_up(M, tm_eff)

    if Hp != H:
        x2d = jnp.pad(x2d, ((0, 0), (0, Hp - H)))
        w1 = jnp.pad(w1, ((0, Hp - H), (0, Hp - H)))
        w2 = jnp.pad(w2, ((0, Hp - H), (0, Hp - H)))
        gamma = jnp.pad(gamma, ((0, Hp - H),))
        beta = jnp.pad(beta, ((0, Hp - H),))
    if Mp != M:
        x2d = jnp.pad(x2d, ((0, Mp - M), (0, 0)))

    gamma2d = gamma.reshape(1, Hp)
    beta2d = beta.reshape(1, Hp)

    kernel = functools.partial(_ffn_kernel, alpha=float(alpha),
                               eps=float(eps), valid_h=int(H))

    # VMEM budget: 2 resident weights + double-buffered (x, out) row tiles
    # + headroom; clamp to [32 MiB, 64 MiB] so the limit is valid on v5e
    # through v7x.
    weight_bytes = 2 * Hp * Hp * w1.dtype.itemsize
    tile_bytes = 2 * 2 * tm_eff * Hp * x.dtype.itemsize  # x + out, 2x buffered
    vmem_limit = int(min(64 << 20,
                         max(32 << 20, weight_bytes + tile_bytes + (8 << 20))))

    out2d = pl.pallas_call(
        kernel,
        out_shape=jax.ShapeDtypeStruct((Mp, Hp), x.dtype),
        grid_spec=pltpu.PrefetchScalarGridSpec(
            num_scalar_prefetch=0,
            grid=(Mp // tm_eff,),
            in_specs=[
                pl.BlockSpec((tm_eff, Hp), lambda i: (i, 0)),  # x row tile
                pl.BlockSpec((Hp, Hp), lambda i: (0, 0)),      # w1 resident
                pl.BlockSpec((Hp, Hp), lambda i: (0, 0)),      # w2 resident
                pl.BlockSpec((1, Hp), lambda i: (0, 0)),       # gamma resident
                pl.BlockSpec((1, Hp), lambda i: (0, 0)),       # beta resident
            ],
            out_specs=pl.BlockSpec((tm_eff, Hp), lambda i: (i, 0)),
        ),
        compiler_params=pltpu.CompilerParams(
            dimension_semantics=("parallel",),
            vmem_limit_bytes=vmem_limit,
        ),
    )(x2d, w1, w2, gamma2d, beta2d)

    out2d = out2d[:M, :H]
    return out2d.reshape(orig_shape)


def ffn_reference(x, w1, w2, gamma, beta, *, alpha=1.0, eps=1e-5):
    h = jnp.maximum(x @ w1, 0.0)
    y = h @ w2 + alpha * x
    mean = jnp.mean(y, axis=-1, keepdims=True)
    var = jnp.mean((y - mean) ** 2, axis=-1, keepdims=True)
    return (y - mean) * lax.rsqrt(var + eps) * gamma + beta


if __name__ == "__main__":
    hidden_dim = 64
    alpha = 1.0
    batch, seq = 2, 8  # M = 16 rows

    key = jax.random.PRNGKey(0)
    kx, k1, k2 = jax.random.split(key, 3)

    x = jax.random.normal(kx, (batch, seq, hidden_dim), dtype=jnp.float32)

    # nn.Linear(hidden, hidden, bias=False): weight (out, in); y = x @ W^T.
    # Store the transposed weight directly so the kernel does x @ w.
    bound = 1.0 / (hidden_dim ** 0.5)
    w1 = jax.random.uniform(k1, (hidden_dim, hidden_dim), jnp.float32, -bound, bound)
    w2 = jax.random.uniform(k2, (hidden_dim, hidden_dim), jnp.float32, -bound, bound)

    # nn.LayerNorm default init: weight = ones, bias = zeros, eps = 1e-5.
    gamma = jnp.ones((hidden_dim,), jnp.float32)
    beta = jnp.zeros((hidden_dim,), jnp.float32)

    out = ffn_pallas(x, w1, w2, gamma, beta, alpha=alpha)
    out = jax.block_until_ready(out)

    ref = ffn_reference(x, w1, w2, gamma, beta, alpha=alpha)
    assert out.shape == x.shape
    assert jnp.allclose(out, ref, atol=1e-4, rtol=1e-4), "mismatch vs reference"

    print("KERNEL_OK")
</pallas_src>

<mosaic_0001>
module attributes {stable_mosaic.version = 11 : i64} {
  func.func @_ffn_kernel(%arg0: i32, %arg1: memref<16x128xf32, #tpu.memory_space<vmem>>, %arg2: memref<128x128xf32, #tpu.memory_space<vmem>>, %arg3: memref<128x128xf32, #tpu.memory_space<vmem>>, %arg4: memref<1x128xf32, #tpu.memory_space<vmem>>, %arg5: memref<1x128xf32, #tpu.memory_space<vmem>>, %arg6: memref<16x128xf32, #tpu.memory_space<vmem>>) attributes {dimension_semantics = [#tpu.dimension_semantics<parallel>], iteration_bounds = array<i64: 1>, scalar_prefetch = 0 : i64, scratch_operands = 0 : i64, tpu.core_type = #tpu.core_type<tc>, window_params = [{transform_indices = @transform_0, window_bounds = array<i64: 16, 128>}, {pipeline_mode = #tpu.pipeline_mode<synchronous>, transform_indices = @transform_1, window_bounds = array<i64: 128, 128>}, {pipeline_mode = #tpu.pipeline_mode<synchronous>, transform_indices = @transform_2, window_bounds = array<i64: 128, 128>}, {pipeline_mode = #tpu.pipeline_mode<synchronous>, transform_indices = @transform_3, window_bounds = array<i64: 1, 128>}, {pipeline_mode = #tpu.pipeline_mode<synchronous>, transform_indices = @transform_4, window_bounds = array<i64: 1, 128>}, {transform_indices = @transform_5, window_bounds = array<i64: 16, 128>}]} {
    %c0 = arith.constant 0 : index
    %c0_0 = arith.constant 0 : index
    %0 = vector.load %arg1[%c0, %c0_0] : memref<16x128xf32, #tpu.memory_space<vmem>>, vector<16x128xf32>
    %c0_1 = arith.constant 0 : index
    %c0_2 = arith.constant 0 : index
    %1 = vector.load %arg2[%c0_1, %c0_2] : memref<128x128xf32, #tpu.memory_space<vmem>>, vector<128x128xf32>
    %cst = arith.constant dense<0.000000e+00> : vector<16x128xf32>
    %2 = tpu.matmul %0, %1, %cst {dimension_numbers = #tpu.dot_dimension_numbers<[1], [0], [0], [1], [0, 0, 1, 1], [], []>} : vector<16x128xf32>, vector<128x128xf32>, vector<16x128xf32> -> vector<16x128xf32>
    %cst_3 = arith.constant 0.000000e+00 : f32
    %3 = vector.broadcast %cst_3 : f32 to vector<16x128xf32>
    %4 = arith.maximumf %2, %3 : vector<16x128xf32>
    %c0_4 = arith.constant 0 : index
    %c0_5 = arith.constant 0 : index
    %5 = vector.load %arg3[%c0_4, %c0_5] : memref<128x128xf32, #tpu.memory_space<vmem>>, vector<128x128xf32>
    %cst_6 = arith.constant dense<0.000000e+00> : vector<16x128xf32>
    %6 = tpu.matmul %4, %5, %cst_6 {dimension_numbers = #tpu.dot_dimension_numbers<[1], [0], [0], [1], [0, 0, 1, 1], [], []>} : vector<16x128xf32>, vector<128x128xf32>, vector<16x128xf32> -> vector<16x128xf32>
    %cst_7 = arith.constant 1.000000e+00 : f32
    %7 = vector.broadcast %cst_7 : f32 to vector<16x128xf32>
    %8 = arith.mulf %7, %0 : vector<16x128xf32>
    %9 = arith.addf %6, %8 : vector<16x128xf32>
    %cst_8 = arith.constant dense<0.000000e+00> : vector<16xf32>
    %10 = vector.multi_reduction <add>, %9, %cst_8 [1] : vector<16x128xf32> to vector<16xf32>
    %11 = vector.shape_cast %10 : vector<16xf32> to vector<16x1xf32>
    %cst_9 = arith.constant 1.562500e-02 : f32
    %12 = vector.broadcast %cst_9 : f32 to vector<16x1xf32>
    %13 = arith.mulf %11, %12 : vector<16x1xf32>
    %14 = vector.broadcast %13 : vector<16x1xf32> to vector<16x128xf32>
    %15 = arith.subf %9, %14 : vector<16x128xf32>
    %16 = tpu.iota {dimensions = array<i32: 1>} : vector<16x128xi32>
    %c64_i32 = arith.constant 64 : i32
    %17 = vector.broadcast %c64_i32 : i32 to vector<16x128xi32>
    %18 = arith.cmpi slt, %16, %17 : vector<16x128xi32>
    %cst_10 = arith.constant 0.000000e+00 : f32
    %19 = vector.broadcast %cst_10 : f32 to vector<16x128xf32>
    %20 = arith.select %18, %15, %19 : vector<16x128xi1>, vector<16x128xf32>
    %21 = arith.mulf %20, %20 : vector<16x128xf32>
    %cst_11 = arith.constant dense<0.000000e+00> : vector<16xf32>
    %22 = vector.multi_reduction <add>, %21, %cst_11 [1] : vector<16x128xf32> to vector<16xf32>
    %23 = vector.shape_cast %22 : vector<16xf32> to vector<16x1xf32>
    %cst_12 = arith.constant 1.562500e-02 : f32
    %24 = vector.broadcast %cst_12 : f32 to vector<16x1xf32>
    %25 = arith.mulf %23, %24 : vector<16x1xf32>
    %cst_13 = arith.constant 9.99999974E-6 : f32
    %26 = vector.broadcast %cst_13 : f32 to vector<16x1xf32>
    %27 = arith.addf %25, %26 : vector<16x1xf32>
    %28 = math.rsqrt %27 : vector<16x1xf32>
    %29 = vector.broadcast %28 : vector<16x1xf32> to vector<16x128xf32>
    %30 = arith.mulf %20, %29 : vector<16x128xf32>
    %c0_14 = arith.constant 0 : index
    %c0_15 = arith.constant 0 : index
    %31 = vector.load %arg4[%c0_14, %c0_15] : memref<1x128xf32, #tpu.memory_space<vmem>>, vector<1x128xf32>
    %32 = vector.broadcast %31 : vector<1x128xf32> to vector<16x128xf32>
    %33 = arith.mulf %30, %32 : vector<16x128xf32>
    %c0_16 = arith.constant 0 : index
    %c0_17 = arith.constant 0 : index
    %34 = vector.load %arg5[%c0_16, %c0_17] : memref<1x128xf32, #tpu.memory_space<vmem>>, vector<1x128xf32>
    %35 = vector.broadcast %34 : vector<1x128xf32> to vector<16x128xf32>
    %36 = arith.addf %33, %35 : vector<16x128xf32>
    %c0_18 = arith.constant 0 : index
    %c0_19 = arith.constant 0 : index
    %37 = vector.load %arg6[%c0_18, %c0_19] : memref<16x128xf32, #tpu.memory_space<vmem>>, vector<16x128xf32>
    tpu.vector_store %arg6[%c0_18, %c0_19], %36 {strides = array<i32>} : memref<16x128xf32, #tpu.memory_space<vmem>>, vector<16x128xf32>,
    return
  }
  func.func @transform_0(%arg0: i32) -> (i32, i32) {
    %c0_i32 = arith.constant 0 : i32
    %c0_i32_0 = arith.constant 0 : i32
    return %arg0, %c0_i32 : i32, i32
  }
  func.func @transform_1(%arg0: i32) -> (i32, i32) {
    %c0_i32 = arith.constant 0 : i32
    %c0_i32_0 = arith.constant 0 : i32
    %c0_i32_1 = arith.constant 0 : i32
    return %c0_i32, %c0_i32_0 : i32, i32
  }
  func.func @transform_2(%arg0: i32) -> (i32, i32) {
    %c0_i32 = arith.constant 0 : i32
    %c0_i32_0 = arith.constant 0 : i32
    %c0_i32_1 = arith.constant 0 : i32
    return %c0_i32, %c0_i32_0 : i32, i32
  }
  func.func @transform_3(%arg0: i32) -> (i32, i32) {
    %c0_i32 = arith.constant 0 : i32
    %c0_i32_0 = arith.constant 0 : i32
    %c0_i32_1 = arith.constant 0 : i32
    return %c0_i32, %c0_i32_0 : i32, i32
  }
  func.func @transform_4(%arg0: i32) -> (i32, i32) {
    %c0_i32 = arith.constant 0 : i32
    %c0_i32_0 = arith.constant 0 : i32
    %c0_i32_1 = arith.constant 0 : i32
    return %c0_i32, %c0_i32_0 : i32, i32
  }
  func.func @transform_5(%arg0: i32) -> (i32, i32) {
    %c0_i32 = arith.constant 0 : i32
    %c0_i32_0 = arith.constant 0 : i32
    return %arg0, %c0_i32 : i32, i32
  }
}

</mosaic_0001>

<llo_original>
// kernel: tpu_custom_call.1
$region0: #{tpu_custom_call.1}
  #allocation0 [shape = 'u32[]', space=smem, size = 0x4, offset = 0x4, fixed_abs, tag = 'smem constant byte address 0x4 - core index']
  #allocation1 [shape = 'u32[144,128]{1,0:T(1,128)}', space=vmem, size = 0x12000, scoped, tag = 'internal scratch']
  %s0 = inlined_call_operand.hbm [shape: f32[16,128], index: 0, kind: input, shape index: {}]
  %s1 = inlined_call_operand.hbm [shape: f32[128,128], index: 1, kind: input, shape index: {}]
  %s2 = inlined_call_operand.hbm [shape: f32[128,128], index: 2, kind: input, shape index: {}]
  %s3 = inlined_call_operand.vmem [shape: f32[1,128], index: 3, kind: input, shape index: {}]
  %s4 = inlined_call_operand.vmem [shape: f32[1,128], index: 4, kind: input, shape index: {}]
  %s5 = inlined_call_operand.hbm [shape: f32[16,128], index: 5, kind: output, shape index: {}]
  %s6 = sld [smem:[#allocation0]]
  $region42: #{tpu_custom_call.1} parent=0
    _
  %s8 = ssub.s32 1, %s6
  %s9 = scalar_select 0, %s8, %s6
  $region1: #{tpu_custom_call.1} parent=0
    #allocation2 [shape = 'u8[8192]{0}', space=vmem, size = 0x2000, scoped, tag = 'input window, operand 0, single buffered']
    #allocation3 [shape = 's32[1]{0}', space=sflag, size = 0x4, scoped, tag = 'scoped memory for tpu_custom_call.1']
    #allocation4 [shape = 's32[1]{0}', space=sflag, size = 0x4, scoped, tag = 'scoped memory for tpu_custom_call.1']
    #allocation5 [shape = 'u8[65536]{0}', space=vmem, size = 0x10000, scoped, tag = 'input window, operand 1, single buffered']
    #allocation6 [shape = 's32[1]{0}', space=sflag, size = 0x4, scoped, tag = 'scoped memory for tpu_custom_call.1']
    #allocation7 [shape = 'u8[65536]{0}', space=vmem, size = 0x10000, scoped, tag = 'input window, operand 2, single buffered']
    #allocation8 [shape = 'u8[8192]{0}', space=vmem, size = 0x2000, scoped, tag = 'output window, operand 0, single buffered']
    %10 = vsyncpa [#allocation3], 0
    %11 = vsyncpa [#allocation6], 0
    %12 = vsyncpa [#allocation4], 0
    // Predicated region
    $region2: #{tpu_custom_call.1} parent=1 // pred_check
      _
    $region3: #{tpu_custom_call.1} parent=1 // pred_check_branch
      %14 = sbr.rel (0) target = $region5
    $region4: #{tpu_custom_call.1} parent=1 // pred_region
      %s16 = ssub.s32 256, 256
      %17 = vsyncadd [#allocation3], %s16
      %s18 = sshll.u32 [#allocation2], 4
      %s19 = int_to_ptr.vmem [resolvable:$true] %s18
      %24 = dma.hbm_to_vmem [thread:$0]  %s0, 256, %s19, [#allocation3], 128, 128, 8
    $region5: #{tpu_custom_call.1} parent=1 // pred_fallthru
      _
    // Predicated region
    $region6: #{tpu_custom_call.1} parent=1 // pred_check
      _
    $region7: #{tpu_custom_call.1} parent=1 // pred_check_branch
      %26 = sbr.rel (0) target = $region9
    $region8: #{tpu_custom_call.1} parent=1 // pred_region
      %s28 = ssub.s32 2048, 2048
      %29 = vsyncadd [#allocation6], %s28
      %s30 = sshll.u32 [#allocation5], 4
      %s31 = int_to_ptr.vmem [resolvable:$true] %s30
      %36 = dma.hbm_to_vmem [thread:$0]  %s1, 2048, %s31, [#allocation6], 128, 128, 8
    $region9: #{tpu_custom_call.1} parent=1 // pred_fallthru
      _
    // Predicated region
    $region10: #{tpu_custom_call.1} parent=1 // pred_check
      _
    $region11: #{tpu_custom_call.1} parent=1 // pred_check_branch
      %38 = sbr.rel (0) target = $region13
    $region12: #{tpu_custom_call.1} parent=1 // pred_region
      %s40 = ssub.s32 2048, 2048
      %41 = vsyncadd [#allocation6], %s40
      %s42 = sshll.u32 [#allocation7], 4
      %s43 = int_to_ptr.vmem [resolvable:$true] %s42
      %48 = dma.hbm_to_vmem [thread:$0]  %s2, 2048, %s43, [#allocation6], 128, 128, 8
    $region13: #{tpu_custom_call.1} parent=1 // pred_fallthru
      _
    // Predicated region
    $region14: #{tpu_custom_call.1} parent=1 // pred_check
      _
    $region15: #{tpu_custom_call.1} parent=1 // pred_check_branch
      %50 = sbr.rel (0) target = $region17
    $region16: #{tpu_custom_call.1} parent=1 // pred_region
      _
    $region17: #{tpu_custom_call.1} parent=1 // pred_fallthru
      _
    // Predicated region
    $region18: #{tpu_custom_call.1} parent=1 // pred_check
      _
    $region19: #{tpu_custom_call.1} parent=1 // pred_check_branch
      %52 = sbr.rel (0) target = $region21
    $region20: #{tpu_custom_call.1} parent=1 // pred_region
      _
    $region21: #{tpu_custom_call.1} parent=1 // pred_fallthru
      _
    // Predicated region
    $region22: #{tpu_custom_call.1} parent=1 // pred_check
      _
    $region23: #{tpu_custom_call.1} parent=1 // pred_check_branch
      %54 = sbr.rel (0) target = $region25
    $region24: #{tpu_custom_call.1} parent=1 // pred_region
      %55 = dma.done [#allocation3], 256
    $region25: #{tpu_custom_call.1} parent=1 // pred_fallthru
      _
    // Predicated region
    $region26: #{tpu_custom_call.1} parent=1 // pred_check
      _
    $region27: #{tpu_custom_call.1} parent=1 // pred_check_branch
      %57 = sbr.rel (0) target = $region29
    $region28: #{tpu_custom_call.1} parent=1 // pred_region
      %58 = dma.done [#allocation6], 2048
    $region29: #{tpu_custom_call.1} parent=1 // pred_fallthru
      _
    // Predicated region
    $region30: #{tpu_custom_call.1} parent=1 // pred_check
      _
    $region31: #{tpu_custom_call.1} parent=1 // pred_check_branch
      %60 = sbr.rel (0) target = $region33
    $region32: #{tpu_custom_call.1} parent=1 // pred_region
      %61 = dma.done [#allocation6], 2048
    $region33: #{tpu_custom_call.1} parent=1 // pred_fallthru
      _
    %v62 = vld [vmem:[#allocation2] sm:$0xff]
    %v63 = vld [vmem:[#allocation2 + $0x8] sm:$0xff]
    %v64 = vld [vmem:[#allocation5] sm:$0xff]
    %v65 = vld [vmem:[#allocation5 + $0x8] sm:$0xff]
    %v66 = vld [vmem:[#allocation5 + $0x10] sm:$0xff]
    %v67 = vld [vmem:[#allocation5 + $0x18] sm:$0xff]
    %v68 = vld [vmem:[#allocation5 + $0x20] sm:$0xff]
    %v69 = vld [vmem:[#allocation5 + $0x28] sm:$0xff]
    %v70 = vld [vmem:[#allocation5 + $0x30] sm:$0xff]
    %v71 = vld [vmem:[#allocation5 + $0x38] sm:$0xff]
    %v72 = vld [vmem:[#allocation5 + $0x40] sm:$0xff]
    %v73 = vld [vmem:[#allocation5 + $0x48] sm:$0xff]
    %v74 = vld [vmem:[#allocation5 + $0x50] sm:$0xff]
    %v75 = vld [vmem:[#allocation5 + $0x58] sm:$0xff]
    %v76 = vld [vmem:[#allocation5 + $0x60] sm:$0xff]
    %v77 = vld [vmem:[#allocation5 + $0x68] sm:$0xff]
    %v78 = vld [vmem:[#allocation5 + $0x70] sm:$0xff]
    %v79 = vld [vmem:[#allocation5 + $0x78] sm:$0xff]
    %80 = vmatprep.subr.mxu0 0.0
    %81 = vmatpush1.msra.mxu0 %v79
    %82 = vmatprep.subr.mxu0 0.0
    %83 = vmatpush1.msra.mxu0 %v78
    %84 = vmatprep.subr.mxu0 0.0
    %85 = vmatpush1.msra.mxu0 %v77
    %86 = vmatprep.subr.mxu0 0.0
    %87 = vmatpush1.msra.mxu0 %v76
    %88 = vmatprep.subr.mxu0 0.0
    %89 = vmatpush1.msra.mxu0 %v75
    %90 = vmatprep.subr.mxu0 0.0
    %91 = vmatpush1.msra.mxu0 %v74
    %92 = vmatprep.subr.mxu0 0.0
    %93 = vmatpush1.msra.mxu0 %v73
    %94 = vmatprep.subr.mxu0 0.0
    %95 = vmatpush1.msra.mxu0 %v72
    %96 = vmatprep.subr.mxu0 0.0
    %97 = vmatpush1.msra.mxu0 %v71
    %98 = vmatprep.subr.mxu0 0.0
    %99 = vmatpush1.msra.mxu0 %v70
    %100 = vmatprep.subr.mxu0 0.0
    %101 = vmatpush1.msra.mxu0 %v69
    %102 = vmatprep.subr.mxu0 0.0
    %103 = vmatpush1.msra.mxu0 %v68
    %104 = vmatprep.subr.mxu0 0.0
    %105 = vmatpush1.msra.mxu0 %v67
    %106 = vmatprep.subr.mxu0 0.0
    %107 = vmatpush1.msra.mxu0 %v66
    %108 = vmatprep.subr.mxu0 0.0
    %109 = vmatpush1.msra.mxu0 %v65
    %110 = vmatprep.subr.mxu0 0.0
    %111 = vmatpush1.msra.mxu0 %v64
    %112 = vmatprep.subr.mxu0 0.0
    %113 = vmatpush2.msra.mxu0 0.0
    %114 = vmatprep.subr.mxu0 0.0
    %115 = vmatpush2.msra.mxu0 0.0
    %116 = vmatprep.subr.mxu0 0.0
    %117 = vmatpush2.msra.mxu0 0.0
    %118 = vmatprep.subr.mxu0 0.0
    %119 = vmatpush2.msra.mxu0 0.0
    %120 = vmatprep.subr.mxu0 0.0
    %121 = vmatpush2.msra.mxu0 0.0
    %122 = vmatprep.subr.mxu0 0.0
    %123 = vmatpush2.msra.mxu0 0.0
    %124 = vmatprep.subr.mxu0 0.0
    %125 = vmatpush2.msra.mxu0 0.0
    %126 = vmatprep.subr.mxu0 0.0
    %127 = vmatpush2.msra.mxu0 0.0
    %128 = vmatprep.subr.mxu0 0.0
    %129 = vmatpush2.msra.mxu0 0.0
    %130 = vmatprep.subr.mxu0 0.0
    %131 = vmatpush2.msra.mxu0 0.0
    %132 = vmatprep.subr.mxu0 0.0
    %133 = vmatpush2.msra.mxu0 0.0
    %134 = vmatprep.subr.mxu0 0.0
    %135 = vmatpush2.msra.mxu0 0.0
    %136 = vmatprep.subr.mxu0 0.0
    %137 = vmatpush2.msra.mxu0 0.0
    %138 = vmatprep.subr.mxu0 0.0
    %139 = vmatpush2.msra.mxu0 0.0
    %140 = vmatprep.subr.mxu0 0.0
    %141 = vmatpush2.msra.mxu0 0.0
    %142 = vmatprep.subr.mxu0 0.0
    %143 = vmatpush2.msra.mxu0 0.0
    %144 = vmatprep.mubr.f32.mxu0 0.0
    %145 = vmatmul.mubr.f32.gmra.mxu0 %v62
    %v146 = vpop.f32.mrf.mxu0
    %v147 = vadd.f32 0.0, %v146
    %v148 = vpop.f32.mrf.mxu0
    %149 = vmatprep.mubr.f32.mxu0 0.0
    %150 = vmatmul.mubr.f32.gmra.mxu0 %v63
    %v151 = vpop.f32.mrf.mxu0
    %v152 = vadd.f32 0.0, %v151
    %v153 = vpop.f32.mrf.mxu0
    %154 = vdwg.mxu0
    %v155 = vmax.f32 %v147, 0.0
    %v156 = vmax.f32 %v152, 0.0
    %v157 = vld [vmem:[#allocation7] sm:$0xff]
    %v158 = vld [vmem:[#allocation7 + $0x8] sm:$0xff]
    %v159 = vld [vmem:[#allocation7 + $0x10] sm:$0xff]
    %v160 = vld [vmem:[#allocation7 + $0x18] sm:$0xff]
    %v161 = vld [vmem:[#allocation7 + $0x20] sm:$0xff]
    %v162 = vld [vmem:[#allocation7 + $0x28] sm:$0xff]
    %v163 = vld [vmem:[#allocation7 + $0x30] sm:$0xff]
    %v164 = vld [vmem:[#allocation7 + $0x38] sm:$0xff]
    %v165 = vld [vmem:[#allocation7 + $0x40] sm:$0xff]
    %v166 = vld [vmem:[#allocation7 + $0x48] sm:$0xff]
    %v167 = vld [vmem:[#allocation7 + $0x50] sm:$0xff]
    %v168 = vld [vmem:[#allocation7 + $0x58] sm:$0xff]
    %v169 = vld [vmem:[#allocation7 + $0x60] sm:$0xff]
    %v170 = vld [vmem:[#allocation7 + $0x68] sm:$0xff]
    %v171 = vld [vmem:[#allocation7 + $0x70] sm:$0xff]
    %v172 = vld [vmem:[#allocation7 + $0x78] sm:$0xff]
    %173 = vmatprep.subr.mxu0 0.0
    %174 = vmatpush1.msra.mxu0 %v172
    %175 = vmatprep.subr.mxu0 0.0
    %176 = vmatpush1.msra.mxu0 %v171
    %177 = vmatprep.subr.mxu0 0.0
    %178 = vmatpush1.msra.mxu0 %v170
    %179 = vmatprep.subr.mxu0 0.0
    %180 = vmatpush1.msra.mxu0 %v169
    %181 = vmatprep.subr.mxu0 0.0
    %182 = vmatpush1.msra.mxu0 %v168
    %183 = vmatprep.subr.mxu0 0.0
    %184 = vmatpush1.msra.mxu0 %v167
    %185 = vmatprep.subr.mxu0 0.0
    %186 = vmatpush1.msra.mxu0 %v166
    %187 = vmatprep.subr.mxu0 0.0
    %188 = vmatpush1.msra.mxu0 %v165
    %189 = vmatprep.subr.mxu0 0.0
    %190 = vmatpush1.msra.mxu0 %v164
    %191 = vmatprep.subr.mxu0 0.0
    %192 = vmatpush1.msra.mxu0 %v163
    %193 = vmatprep.subr.mxu0 0.0
    %194 = vmatpush1.msra.mxu0 %v162
    %195 = vmatprep.subr.mxu0 0.0
    %196 = vmatpush1.msra.mxu0 %v161
    %197 = vmatprep.subr.mxu0 0.0
    %198 = vmatpush1.msra.mxu0 %v160
    %199 = vmatprep.subr.mxu0 0.0
    %200 = vmatpush1.msra.mxu0 %v159
    %201 = vmatprep.subr.mxu0 0.0
    %202 = vmatpush1.msra.mxu0 %v158
    %203 = vmatprep.subr.mxu0 0.0
    %204 = vmatpush1.msra.mxu0 %v157
    %205 = vmatprep.subr.mxu0 0.0
    %206 = vmatpush2.msra.mxu0 0.0
    %207 = vmatprep.subr.mxu0 0.0
    %208 = vmatpush2.msra.mxu0 0.0
    %209 = vmatprep.subr.mxu0 0.0
    %210 = vmatpush2.msra.mxu0 0.0
    %211 = vmatprep.subr.mxu0 0.0
    %212 = vmatpush2.msra.mxu0 0.0
    %213 = vmatprep.subr.mxu0 0.0
    %214 = vmatpush2.msra.mxu0 0.0
    %215 = vmatprep.subr.mxu0 0.0
    %216 = vmatpush2.msra.mxu0 0.0
    %217 = vmatprep.subr.mxu0 0.0
    %218 = vmatpush2.msra.mxu0 0.0
    %219 = vmatprep.subr.mxu0 0.0
    %220 = vmatpush2.msra.mxu0 0.0
    %221 = vmatprep.subr.mxu0 0.0
    %222 = vmatpush2.msra.mxu0 0.0
    %223 = vmatprep.subr.mxu0 0.0
    %224 = vmatpush2.msra.mxu0 0.0
    %225 = vmatprep.subr.mxu0 0.0
    %226 = vmatpush2.msra.mxu0 0.0
    %227 = vmatprep.subr.mxu0 0.0
    %228 = vmatpush2.msra.mxu0 0.0
    %229 = vmatprep.subr.mxu0 0.0
    %230 = vmatpush2.msra.mxu0 0.0
    %231 = vmatprep.subr.mxu0 0.0
    %232 = vmatpush2.msra.mxu0 0.0
    %233 = vmatprep.subr.mxu0 0.0
    %234 = vmatpush2.msra.mxu0 0.0
    %235 = vmatprep.subr.mxu0 0.0
    %236 = vmatpush2.msra.mxu0 0.0
    %237 = vmatprep.mubr.f32.mxu0 0.0
    %238 = vmatmul.mubr.f32.gmra.mxu0 %v155
    %v239 = vpop.f32.mrf.mxu0
    %v240 = vadd.f32 %v62, %v239
    %v241 = vpop.f32.mrf.mxu0
    %242 = vmatprep.mubr.f32.mxu0 0.0
    %243 = vmatmul.mubr.f32.gmra.mxu0 %v156
    %v244 = vpop.f32.mrf.mxu0
    %v245 = vadd.f32 %v63, %v244
    %v246 = vpop.f32.mrf.mxu0
    %247 = vdwg.mxu0
    %248 = vadd.xlane.f32.xlu0 %v240
    %v249 = vpop.xlane.xlu0 %248
    %250 = vadd.xlane.f32.xlu0 %v245
    %v251 = vpop.xlane.xlu0 %250
    %v252 = vmul.f32 %v249, 0.015625
    %v253 = vmul.f32 %v251, 0.015625
    %v254 = vsub.f32 %v240, %v252
    %v255 = vsub.f32 %v245, %v253
    %v256 = vlaneseq
    %v257 = vand.u32 %v256, 127
    %vm258 = vcmp.lt.s32.totalorder %v257, 64
    %v259 = vsel %vm258, %v254, 0.0
    %v260 = vsel %vm258, %v255, 0.0
    %v261 = vmul.f32 %v259, %v259
    %v262 = vmul.f32 %v260, %v260
    %263 = vadd.xlane.f32.xlu0 %v261
    %v264 = vpop.xlane.xlu0 %263
    %265 = vadd.xlane.f32.xlu0 %v262
    %v266 = vpop.xlane.xlu0 %265
    %v267 = vmul.f32 %v264, 0.015625
    %v268 = vmul.f32 %v266, 0.015625
    %v269 = vadd.f32 %v267, 1e-05
    %v270 = vadd.f32 %v268, 1e-05
    %v271 = vrsqrt.pop %v269
    %v272 = vrsqrt.pop %v270
    %v273 = vmul.f32 %v259, %v271
    %v274 = vmul.f32 %v260, %v272
    %v275 = vld [vmem:[%s3] sm:$0x1]
    %v277 = vlaneseq
    %v278 = vshrl.u32 %v277, 7
    %v279 = vsub.s32 0, %v278
    %v280 = vrot.slane %v275, %v279
    %v282 = vmul.f32 %v273, %v280
    %v283 = vmul.f32 %v274, %v280
    %v284 = vld [vmem:[%s4] sm:$0x1]
    %v286 = vlaneseq
    %v287 = vshrl.u32 %v286, 7
    %v288 = vsub.s32 0, %v287
    %v289 = vrot.slane %v284, %v288
    %v291 = vadd.f32 %v282, %v289
    %v292 = vadd.f32 %v283, %v289
    %293 = vst [vmem:[#allocation8] sm:$0xff] %v291
    %294 = vst [vmem:[#allocation8 + $0x8] sm:$0xff] %v292
    // Predicated region
    $region34: #{tpu_custom_call.1} parent=1 // pred_check
      _
    $region35: #{tpu_custom_call.1} parent=1 // pred_check_branch
      %296 = sbr.rel (0) target = $region37
    $region36: #{tpu_custom_call.1} parent=1 // pred_region
      %s298 = ssub.s32 256, 256
      %299 = vsyncadd [#allocation4], %s298
      %s300 = sshll.u32 [#allocation8], 4
      %s301 = int_to_ptr.vmem [resolvable:$true] %s300
      %306 = dma.vmem_to_hbm [thread:$0]  %s301, 256, %s5, [#allocation4], 128, 128, 8
    $region37: #{tpu_custom_call.1} parent=1 // pred_fallthru
      _
    // Predicated region
    $region38: #{tpu_custom_call.1} parent=1 // pred_check
      _
    $region39: #{tpu_custom_call.1} parent=1 // pred_check_branch
      %308 = sbr.rel (0) target = $region41
    $region40: #{tpu_custom_call.1} parent=1 // pred_region
      %309 = dma.done [#allocation4], 256
    $region41: #{tpu_custom_call.1} parent=1 // pred_fallthru
      _
    %310 = vsyncpa [#allocation3], 1
    %311 = vsyncpa [#allocation6], 1
    %312 = vsyncpa [#allocation4], 1

</llo_original>
